<compile_context>
chip_gen: v6e
topology: v6e:2x2x1
jax: 0.10.0
libtpu: 0.0.40
codegen_flags: <defaults>
</compile_context>

<pallas_src>
import math

import jax
import jax.numpy as jnp
from jax.experimental import pallas as pl
from jax.experimental.pallas import tpu as pltpu

_LANES = 128
_SUBLANES = 8
_BLOCK_ROWS = 1024                 # sublane-rows per grid step (x 128 lanes)
_VMEM_LIMIT = 32 * 1024 * 1024     # safe on v5e/v6e/v7x

# Deterministic nn.Linear(2, 1) parameters from the spec, folded into the
# kernels as compile-time constants (the 1.0 mults / +0.0 fold away).
_W0, _W1, _BIAS = 1.0, 1.0, 0.0


def _round_up(x: int, m: int) -> int:
    return (x + m - 1) // m * m


def _ceil_div(x: int, m: int) -> int:
    return (x + m - 1) // m


# ---------------------------------------------------------------------------
# Kernels
# ---------------------------------------------------------------------------
def _linear_kernel(a_ref, b_ref, o_ref):
    # Linear(2,1): y = w0*x0 + w1*x1 + b on lane-dense (block_rows, 128) slabs.
    # Pure VPU elementwise add; inputs and output are fully lane-dense.
    o_ref[...] = (_W0 * a_ref[...] + _W1 * b_ref[...] + _BIAS).astype(o_ref.dtype)


def _make_rowsum_kernel(num_inputs):
    # sum(cat(x, dim=2), dim=-1, keepdim=True), with the concat fused:
    # accumulate each input's per-row sum inside the kernel.
    def kernel(*refs):
        in_refs, o_ref = refs[:num_inputs], refs[num_inputs]
        acc = jnp.sum(in_refs[0][...], axis=-1, keepdims=True)
        for r in in_refs[1:]:
            acc = acc + jnp.sum(r[...], axis=-1, keepdims=True)
        o_ref[...] = acc.astype(o_ref.dtype)

    return kernel


# ---------------------------------------------------------------------------
# Forward wrappers (whole path jitted so slicing/pad/reshape fuse into one exe)
# ---------------------------------------------------------------------------
@jax.jit
def _tensor_forward(x):
    x = x.astype(jnp.float32)
    assert x.shape[-1] == 2, "nn.Linear(2, 1) expects trailing feature dim 2"
    lead = x.shape[:-1]
    n = int(math.prod(lead))

    # De-interleave the two feature columns into contiguous lane-dense slabs.
    a = x[..., 0].reshape(n)
    b = x[..., 1].reshape(n)

    block_rows = min(_BLOCK_ROWS, _round_up(_ceil_div(n, _LANES), _SUBLANES))
    npad = _round_up(n, block_rows * _LANES)
    if npad != n:
        a = jnp.pad(a, (0, npad - n))
        b = jnp.pad(b, (0, npad - n))
    r = npad // _LANES
    a2d = a.reshape(r, _LANES)
    b2d = b.reshape(r, _LANES)

    out = pl.pallas_call(
        _linear_kernel,
        out_shape=jax.ShapeDtypeStruct((r, _LANES), jnp.float32),
        grid=(r // block_rows,),
        in_specs=[
            pl.BlockSpec((block_rows, _LANES), lambda i: (i, 0)),
            pl.BlockSpec((block_rows, _LANES), lambda i: (i, 0)),
        ],
        out_specs=pl.BlockSpec((block_rows, _LANES), lambda i: (i, 0)),
        compiler_params=pltpu.CompilerParams(
            dimension_semantics=("parallel",),
            vmem_limit_bytes=_VMEM_LIMIT,
        ),
    )(a2d, b2d)
    return out.reshape(npad)[:n].reshape(*lead, 1)


@jax.jit
def _list_forward(xs):
    xs = [xi.astype(jnp.float32) for xi in xs]
    b_, s_ = xs[0].shape[0], xs[0].shape[1]
    for xi in xs:
        assert xi.ndim == 3 and xi.shape[:2] == (b_, s_)
    n = b_ * s_
    flats = [xi.reshape(n, xi.shape[2]) for xi in xs]

    block_rows = min(_BLOCK_ROWS, _round_up(n, _SUBLANES))
    npad = _round_up(n, block_rows)
    if npad != n:
        flats = [jnp.pad(f, ((0, npad - n), (0, 0))) for f in flats]

    out = pl.pallas_call(
        _make_rowsum_kernel(len(flats)),
        out_shape=jax.ShapeDtypeStruct((npad, 1), jnp.float32),
        grid=(npad // block_rows,),
        in_specs=[
            pl.BlockSpec((block_rows, f.shape[1]), lambda i: (i, 0)) for f in flats
        ],
        out_specs=pl.BlockSpec((block_rows, 1), lambda i: (i, 0)),
        compiler_params=pltpu.CompilerParams(
            dimension_semantics=("parallel",),
            vmem_limit_bytes=_VMEM_LIMIT,
        ),
    )(*flats)

    out = out[:n].reshape(b_, s_, 1)
    assert out.ndim == 3 and out.shape[-1] == 1
    return out


class DiscriminatorMock:
    """JAX/Pallas port of the PyTorch DiscriminatorMock.

    Tensor input -> nn.Linear(2, 1) with W=[[1, 1]], b=[0]  (VPU add kernel
                    over lane-dense slabs).
    List input   -> sum(cat(x, dim=2), dim=-1, keepdim=True) (fused row-sum
                    kernel; the concatenated array never hits HBM).
    """

    def __init__(self):
        # Kept for introspection / parity with the torch module; the kernels
        # fold these deterministic constants at compile time.
        self.weight = jnp.array([[_W0, _W1]], dtype=jnp.float32)  # (out=1, in=2)
        self.bias = jnp.array([_BIAS], dtype=jnp.float32)         # (1,)

    def __call__(self, x, lengths=None):
        if isinstance(x, (list, tuple)):
            return _list_forward(list(x))
        return _tensor_forward(x)


# ---------------------------------------------------------------------------
# Demo / self-test
# ---------------------------------------------------------------------------
if __name__ == "__main__":
    key = jax.random.PRNGKey(0)
    k1, k2, k3, k4, k5, k6 = jax.random.split(key, 6)

    model = DiscriminatorMock()

    # --- Tensor path: (batch=2, seq=8, features=2) ---
    x = jax.random.normal(k1, (2, 8, 2), dtype=jnp.float32)
    y = jax.block_until_ready(model(x))
    y_ref = x @ model.weight.T + model.bias[0]      # plain-JAX reference
    assert y.shape == (2, 8, 1)
    assert jnp.allclose(y, y_ref, atol=1e-5, rtol=1e-5)

    # Tensor path with a ragged row count (exercises padding / slab packing).
    xl = jax.random.normal(k2, (3, 1000, 2), dtype=jnp.float32)
    yl = jax.block_until_ready(model(xl))
    assert yl.shape == (3, 1000, 1)
    assert jnp.allclose(yl, jnp.sum(xl, axis=-1, keepdims=True), atol=1e-5, rtol=1e-5)

    # --- List path: cat(dim=2) + sum(dim=-1, keepdim=True), fused in-kernel ---
    xs = [
        jax.random.normal(k3, (2, 8, 3), dtype=jnp.float32),
        jax.random.normal(k4, (2, 8, 5), dtype=jnp.float32),
    ]
    y2 = jax.block_until_ready(model(xs))
    y2_ref = jnp.sum(jnp.concatenate(xs, axis=2), axis=-1, keepdims=True)
    assert y2.shape == (2, 8, 1)
    assert jnp.allclose(y2, y2_ref, atol=1e-5, rtol=1e-5)

    # List path with a row count that needs a multi-block grid + row padding.
    xs_l = [
        jax.random.normal(k5, (2, 1500, 4), dtype=jnp.float32),
        jax.random.normal(k6, (2, 1500, 2), dtype=jnp.float32),
    ]
    y3 = jax.block_until_ready(model(xs_l))
    y3_ref = jnp.sum(jnp.concatenate(xs_l, axis=2), axis=-1, keepdims=True)
    assert y3.shape == (2, 1500, 1)
    assert jnp.allclose(y3, y3_ref, atol=1e-5, rtol=1e-5)

    print("KERNEL_OK")
</pallas_src>

<mosaic_0001>
module attributes {stable_mosaic.version = 11 : i64} {
  func.func @_linear_kernel(%arg0: i32, %arg1: memref<8x128xf32, #tpu.memory_space<vmem>>, %arg2: memref<8x128xf32, #tpu.memory_space<vmem>>, %arg3: memref<8x128xf32, #tpu.memory_space<vmem>>) attributes {dimension_semantics = [#tpu.dimension_semantics<parallel>], iteration_bounds = array<i64: 1>, scalar_prefetch = 0 : i64, scratch_operands = 0 : i64, tpu.core_type = #tpu.core_type<tc>, window_params = [{transform_indices = @transform_0, window_bounds = array<i64: 8, 128>}, {transform_indices = @transform_1, window_bounds = array<i64: 8, 128>}, {transform_indices = @transform_2, window_bounds = array<i64: 8, 128>}]} {
    %c0 = arith.constant 0 : index
    %c0_0 = arith.constant 0 : index
    %0 = vector.load %arg1[%c0, %c0_0] : memref<8x128xf32, #tpu.memory_space<vmem>>, vector<8x128xf32>
    %cst = arith.constant 1.000000e+00 : f32
    %1 = vector.broadcast %cst : f32 to vector<8x128xf32>
    %2 = arith.mulf %1, %0 : vector<8x128xf32>
    %c0_1 = arith.constant 0 : index
    %c0_2 = arith.constant 0 : index
    %3 = vector.load %arg2[%c0_1, %c0_2] : memref<8x128xf32, #tpu.memory_space<vmem>>, vector<8x128xf32>
    %cst_3 = arith.constant 1.000000e+00 : f32
    %4 = vector.broadcast %cst_3 : f32 to vector<8x128xf32>
    %5 = arith.mulf %4, %3 : vector<8x128xf32>
    %6 = arith.addf %2, %5 : vector<8x128xf32>
    %cst_4 = arith.constant 0.000000e+00 : f32
    %7 = vector.broadcast %cst_4 : f32 to vector<8x128xf32>
    %8 = arith.addf %6, %7 : vector<8x128xf32>
    %c0_5 = arith.constant 0 : index
    %c0_6 = arith.constant 0 : index
    %9 = vector.load %arg3[%c0_5, %c0_6] : memref<8x128xf32, #tpu.memory_space<vmem>>, vector<8x128xf32>
    tpu.vector_store %arg3[%c0_5, %c0_6], %8 {strides = array<i32>} : memref<8x128xf32, #tpu.memory_space<vmem>>, vector<8x128xf32>,
    return
  }
  func.func @transform_0(%arg0: i32) -> (i32, i32) {
    %c0_i32 = arith.constant 0 : i32
    %c0_i32_0 = arith.constant 0 : i32
    return %arg0, %c0_i32 : i32, i32
  }
  func.func @transform_1(%arg0: i32) -> (i32, i32) {
    %c0_i32 = arith.constant 0 : i32
    %c0_i32_0 = arith.constant 0 : i32
    return %arg0, %c0_i32 : i32, i32
  }
  func.func @transform_2(%arg0: i32) -> (i32, i32) {
    %c0_i32 = arith.constant 0 : i32
    %c0_i32_0 = arith.constant 0 : i32
    return %arg0, %c0_i32 : i32, i32
  }
}

</mosaic_0001>

<llo_original>
// kernel: squeeze.3
$region0: #{squeeze.3}
  %s0 = inlined_call_operand.vmem [shape: f32[2,8], index: 0, kind: input, shape index: {}]
  %s1 = inlined_call_operand.vmem [shape: f32[16], index: 1, kind: output, shape index: {}]
  $region1: #{squeeze.3} parent=0
    #allocation0 [shape = 'u8[4096]{0}', space=vmem, size = 0x1000, scoped, tag = 'scoped mem for output reshape']
    #allocation1 [shape = 'u8[4096]{0}', space=vmem, size = 0x1000, scoped, tag = 'scoped mem for input reshape']
    %s3 = sshll.u32 1, 2
    %s4 = ssub.s32 %s3, 1
    %v5 = vld [vmem:[%s0] sm:%s4]
    %6 = vst [vmem:[#allocation1] sm:%s4] %v5
    %v7 = vld [vmem:[#allocation1] sm:$0x1]
    %vm8 = vcmask 64512
    %9 = vst.msk [vmem:[#allocation0] sm:$0x1] %vm8, %v7
    %s10 = scalar_lea.vmem [#allocation1], 1
    %v11 = vld [vmem:[%s10] sm:$0x1]
    %12 = vrot.lane.b32.xlu0 %v11, 8
    %v13 = vpop.permute.xlu0 %12
    %vm14 = vcmask 130112
    %15 = vst.msk [vmem:[#allocation0] sm:$0x1] %vm14, %v13
    %s17 = sshll.u32 1, 1
    %s18 = ssub.s32 %s17, 1
    %v20 = vld [vmem:[#allocation0] sm:%s18]
    %s21 = sshll.u32 1, 1
    %s22 = ssub.s32 %s21, 1
    %23 = vst [vmem:[%s1] sm:%s22] %v20

// kernel: _tensor_forward.1
$region0: #{_tensor_forward.1}
  #allocation0 [shape = 'u32[]', space=smem, size = 0x4, offset = 0x4, fixed_abs, tag = 'smem constant byte address 0x4 - core index']
  #allocation1 [shape = 'u32[144,128]{1,0:T(1,128)}', space=vmem, size = 0x12000, scoped, tag = 'internal scratch']
  %s0 = inlined_call_operand.vmem [shape: f32[8,128], index: 0, kind: input, shape index: {}]
  %s1 = inlined_call_operand.vmem [shape: f32[8,128], index: 1, kind: input, shape index: {}]
  %s2 = inlined_call_operand.vmem [shape: f32[8,128], index: 2, kind: output, shape index: {}]
  %s3 = sld [smem:[#allocation0]]
  $region18: #{_tensor_forward.1} parent=0
    _
  %s5 = ssub.s32 1, %s3
  %s6 = scalar_select 0, %s5, %s3
  // Predicated region
  $region2: #{_tensor_forward.1} parent=0 // pred_check
    _
  $region3: #{_tensor_forward.1} parent=0 // pred_check_branch
    %8 = sbr.rel (0) target = $region5
  $region4: #{_tensor_forward.1} parent=0 // pred_region
    _
  $region5: #{_tensor_forward.1} parent=0 // pred_fallthru
    _
  // Predicated region
  $region6: #{_tensor_forward.1} parent=0 // pred_check
    _
  $region7: #{_tensor_forward.1} parent=0 // pred_check_branch
    %10 = sbr.rel (0) target = $region9
  $region8: #{_tensor_forward.1} parent=0 // pred_region
    _
  $region9: #{_tensor_forward.1} parent=0 // pred_fallthru
    _
  %v11 = vld [vmem:[%s0] sm:$0xff]
  %v12 = vld [vmem:[%s1] sm:$0xff]
  %v13 = vadd.f32 %v11, %v12
  %v14 = vadd.f32 %v13, 0.0
  %15 = vst [vmem:[%s2] sm:$0xff] %v14
  // Predicated region
  $region10: #{_tensor_forward.1} parent=0 // pred_check
    _
  $region11: #{_tensor_forward.1} parent=0 // pred_check_branch
    %17 = sbr.rel (0) target = $region13
  $region12: #{_tensor_forward.1} parent=0 // pred_region
    _
  $region13: #{_tensor_forward.1} parent=0 // pred_fallthru
    _
  // Predicated region
  $region14: #{_tensor_forward.1} parent=0 // pred_check
    _
  $region15: #{_tensor_forward.1} parent=0 // pred_check_branch
    %19 = sbr.rel (0) target = $region17
  $region16: #{_tensor_forward.1} parent=0 // pred_region
    _
  $region17: #{_tensor_forward.1} parent=0 // pred_fallthru
    _

</llo_original>
